<compile_context>
chip_gen: v5e
topology: v5e:2x2
jax: 0.10.0
libtpu: 0.0.40
codegen_flags: <defaults>
</compile_context>

<pallas_src>
import functools

import jax
import jax.numpy as jnp
from jax import lax
from jax.experimental import pallas as pl
from jax.experimental.pallas import tpu as pltpu


def _round_up(v, m):
    return (v + m - 1) // m * m


def _cdiv(a, b):
    return (a + b - 1) // b


def _sublane_rows(dtype):
    # Native sublane packing: 8 rows for 32-bit, 16 for 16-bit, 32 for 8-bit.
    return max(8, 32 // jnp.dtype(dtype).itemsize)


def _vmem_capacity_bytes():
    try:
        return int(pltpu.get_tpu_info().vmem_capacity_bytes)
    except Exception:
        return 128 * 1024 * 1024  # v5e/v6e default if query unavailable


def _budgets():
    """(scoped vmem limit, per-tile byte target, fused-path live-set cap)."""
    cap = _vmem_capacity_bytes()
    if cap >= 128 * 1024 * 1024:          # v5e / v6e: 128 MiB physical VMEM
        return 64 * 1024 * 1024, 8 * 1024 * 1024, 48 * 1024 * 1024
    else:                                 # v7x: 64 MiB VMEM per TensorCore
        return 32 * 1024 * 1024, 4 * 1024 * 1024, 24 * 1024 * 1024


# ---------------------------------------------------------------------------
# Kernels
# ---------------------------------------------------------------------------

def _gx_kernel(x_ref, gx_ref, *, true_n, masked, row_tile):
    """Per-row L2 norm over the feature (lane) dim for one row tile."""
    xf = x_ref[...].astype(jnp.float32)   # accumulate reduction in f32
    gx = jnp.sqrt(jnp.sum(xf * xf, axis=1, keepdims=True))
    if masked:
        # Ragged last tile: OOB rows read garbage -> zero them explicitly
        # (their writes are dropped anyway, but keep Gx well-defined).
        row = pl.program_id(0) * row_tile + lax.broadcasted_iota(
            jnp.int32, (row_tile, 1), 0)
        gx = jnp.where(row < true_n, gx, 0.0)
    gx_ref[...] = gx


def _apply_kernel(x_ref, gx_ref, inv_ref, gamma_ref, beta_ref, o_ref):
    """out = gamma * (x * (gx * inv_denom)) + beta for one row tile."""
    nx = gx_ref[...] * inv_ref[0, 0]       # (tr, 1) f32, inv_denom from SMEM
    gamma = gamma_ref[...]                  # (1, D), resident across grid steps
    beta = beta_ref[...]
    o_ref[...] = (gamma * (x_ref[...] * nx) + beta).astype(o_ref.dtype)


def _fused_kernel(x_ref, gamma_ref, beta_ref, o_ref, *, eps, true_n):
    """Single-pass GRN with the whole tensor resident in VMEM."""
    x = x_ref[...]
    xf = x.astype(jnp.float32)
    gx = jnp.sqrt(jnp.sum(xf * xf, axis=1, keepdims=True))        # (N, 1)
    mean = jnp.sum(gx, axis=0, keepdims=True) / true_n            # (1, 1)
    nx = gx / (mean + eps)
    o_ref[...] = (gamma_ref[...] * (x * nx) + beta_ref[...]).astype(o_ref.dtype)


# ---------------------------------------------------------------------------
# Wrapper
# ---------------------------------------------------------------------------

def grn(x, gamma, beta, eps=1e-6, row_tile=None, force_streaming=False):
    """x: (N, D); gamma/beta: (1, D). Returns (N, D) with x.dtype."""
    N, D = x.shape
    itemsize = jnp.dtype(x.dtype).itemsize
    vmem_limit, max_tile_bytes, fused_live_cap = _budgets()

    d_lane = _round_up(D, 128)          # internal lane padding (footprint only)
    sub = _sublane_rows(x.dtype)
    n_sub = _round_up(N, sub)

    # ---- Fused single-pass path: x read from HBM exactly once. --------------
    # Live-set estimate: x in + out (x dtype) + ~2 f32-sized temporaries.
    fused_live = n_sub * d_lane * (2 * itemsize + 2 * 4) + 4 * d_lane * 4
    if (not force_streaming) and fused_live <= fused_live_cap:
        return pl.pallas_call(
            functools.partial(_fused_kernel, eps=float(eps), true_n=float(N)),
            out_shape=jax.ShapeDtypeStruct((N, D), x.dtype),
            compiler_params=pltpu.CompilerParams(vmem_limit_bytes=vmem_limit),
        )(x, gamma, beta)

    # ---- Streaming two-pass path (no jnp.pad of x, no output slice). --------
    if row_tile is None:
        row_tile = max_tile_bytes // max(1, d_lane * itemsize)
    row_tile = max(sub, (row_tile // sub) * sub)
    row_tile = min(row_tile, n_sub)
    # Keep >= 2 grid steps when N permits so v7x's two TensorCores are fed.
    if N >= 2 * sub:
        row_tile = min(row_tile, _round_up(_cdiv(N, 2), sub))
    nt = _cdiv(N, row_tile)
    masked = (N % row_tile) != 0

    cparams = pltpu.CompilerParams(
        dimension_semantics=("parallel",),
        vmem_limit_bytes=vmem_limit,
    )

    # Pass 1: per-row Gx. Full-D blocks (legal even when D % 128 != 0).
    gx = pl.pallas_call(
        functools.partial(_gx_kernel, true_n=N, masked=masked, row_tile=row_tile),
        out_shape=jax.ShapeDtypeStruct((N, 1), jnp.float32),
        grid=(nt,),
        in_specs=[pl.BlockSpec((row_tile, D), lambda i: (i, 0))],
        out_specs=pl.BlockSpec((row_tile, 1), lambda i: (i, 0)),
        compiler_params=cparams,
    )(x)

    # Tiny scalar reduce over the true N rows (gx has exactly N rows because
    # OOB writes of the ragged last tile were dropped).
    inv_denom = 1.0 / (jnp.sum(gx) / jnp.float32(N) + jnp.float32(eps))
    inv_denom = inv_denom.reshape(1, 1).astype(jnp.float32)

    # Pass 2: apply scaling + affine, streaming row tiles; OOB writes dropped.
    out = pl.pallas_call(
        _apply_kernel,
        out_shape=jax.ShapeDtypeStruct((N, D), x.dtype),
        grid=(nt,),
        in_specs=[
            pl.BlockSpec((row_tile, D), lambda i: (i, 0)),
            pl.BlockSpec((row_tile, 1), lambda i: (i, 0)),
            pl.BlockSpec(memory_space=pltpu.MemorySpace.SMEM),  # inv_denom (1,1)
            pl.BlockSpec((1, D), lambda i: (0, 0)),             # gamma resident
            pl.BlockSpec((1, D), lambda i: (0, 0)),             # beta resident
        ],
        out_specs=pl.BlockSpec((row_tile, D), lambda i: (i, 0)),
        compiler_params=cparams,
    )(x, gx, inv_denom, gamma, beta)
    return out


def grn_reference(x, gamma, beta, eps=1e-6):
    gx = jnp.sqrt(jnp.sum(x * x, axis=1, keepdims=True))
    nx = gx / (jnp.mean(gx, axis=0, keepdims=True) + eps)
    return gamma * (x * nx) + beta


if __name__ == "__main__":
    key = jax.random.PRNGKey(0)
    k1, k2, k3, k4 = jax.random.split(key, 4)

    # Case 1: small shape implied by the module -> fused single-pass path.
    N, D = 8, 32
    x = jax.random.normal(k1, (N, D), dtype=jnp.float32)
    gamma = 1.0 + 0.1 * jax.random.normal(k2, (1, D), dtype=jnp.float32)
    beta = 0.1 * jax.random.normal(k3, (1, D), dtype=jnp.float32)

    out = jax.block_until_ready(grn(x, gamma, beta))
    ref = grn_reference(x, gamma, beta)
    assert out.shape == (N, D)
    assert jnp.allclose(out, ref, atol=1e-4, rtol=1e-4), "mismatch (fused path)"

    # Case 2: streaming two-pass path with ragged N (masking) and D % 128 != 0.
    N2, D2 = 100, 200
    x2 = jax.random.normal(k4, (N2, D2), dtype=jnp.float32)
    gamma2 = jnp.ones((1, D2), dtype=jnp.float32)   # default nn.Parameter init
    beta2 = jnp.zeros((1, D2), dtype=jnp.float32)
    out2 = jax.block_until_ready(
        grn(x2, gamma2, beta2, row_tile=32, force_streaming=True))
    ref2 = grn_reference(x2, gamma2, beta2)
    assert out2.shape == (N2, D2)
    assert jnp.allclose(out2, ref2, atol=1e-4, rtol=1e-4), "mismatch (stream path)"

    print("KERNEL_OK")
</pallas_src>

<mosaic_0001>
module attributes {stable_mosaic.version = 11 : i64} {
  func.func @_fused_kernel(%arg0: memref<8x32xf32, #tpu.memory_space<vmem>>, %arg1: memref<1x32xf32, #tpu.memory_space<vmem>>, %arg2: memref<1x32xf32, #tpu.memory_space<vmem>>, %arg3: memref<8x32xf32, #tpu.memory_space<vmem>>) attributes {dimension_semantics = [], scalar_prefetch = 0 : i64, scratch_operands = 0 : i64, tpu.core_type = #tpu.core_type<tc>} {
    %c0 = arith.constant 0 : index
    %c0_0 = arith.constant 0 : index
    %0 = vector.load %arg0[%c0, %c0_0] : memref<8x32xf32, #tpu.memory_space<vmem>>, vector<8x32xf32>
    %1 = arith.mulf %0, %0 : vector<8x32xf32>
    %cst = arith.constant dense<0.000000e+00> : vector<8xf32>
    %2 = vector.multi_reduction <add>, %1, %cst [1] : vector<8x32xf32> to vector<8xf32>
    %3 = vector.shape_cast %2 : vector<8xf32> to vector<8x1xf32>
    %4 = math.sqrt %3 : vector<8x1xf32>
    %cst_1 = arith.constant dense<0.000000e+00> : vector<1xf32>
    %5 = vector.multi_reduction <add>, %4, %cst_1 [0] : vector<8x1xf32> to vector<1xf32>
    %6 = vector.shape_cast %5 : vector<1xf32> to vector<1x1xf32>
    %cst_2 = arith.constant 8.000000e+00 : f32
    %7 = vector.broadcast %cst_2 : f32 to vector<1x1xf32>
    %8 = arith.divf %6, %7 : vector<1x1xf32>
    %cst_3 = arith.constant 9.99999997E-7 : f32
    %9 = vector.broadcast %cst_3 : f32 to vector<1x1xf32>
    %10 = arith.addf %8, %9 : vector<1x1xf32>
    %11 = vector.broadcast %10 : vector<1x1xf32> to vector<8x1xf32>
    %12 = arith.divf %4, %11 : vector<8x1xf32>
    %c0_4 = arith.constant 0 : index
    %c0_5 = arith.constant 0 : index
    %13 = vector.load %arg1[%c0_4, %c0_5] : memref<1x32xf32, #tpu.memory_space<vmem>>, vector<1x32xf32>
    %14 = vector.broadcast %12 : vector<8x1xf32> to vector<8x32xf32>
    %15 = arith.mulf %0, %14 : vector<8x32xf32>
    %16 = vector.broadcast %13 : vector<1x32xf32> to vector<8x32xf32>
    %17 = arith.mulf %16, %15 : vector<8x32xf32>
    %c0_6 = arith.constant 0 : index
    %c0_7 = arith.constant 0 : index
    %18 = vector.load %arg2[%c0_6, %c0_7] : memref<1x32xf32, #tpu.memory_space<vmem>>, vector<1x32xf32>
    %19 = vector.broadcast %18 : vector<1x32xf32> to vector<8x32xf32>
    %20 = arith.addf %17, %19 : vector<8x32xf32>
    %c0_8 = arith.constant 0 : index
    %c0_9 = arith.constant 0 : index
    %21 = vector.load %arg3[%c0_8, %c0_9] : memref<8x32xf32, #tpu.memory_space<vmem>>, vector<8x32xf32>
    tpu.vector_store %arg3[%c0_8, %c0_9], %20 {strides = array<i32>} : memref<8x32xf32, #tpu.memory_space<vmem>>, vector<8x32xf32>,
    return
  }
}

</mosaic_0001>

<llo_original>
// kernel: tpu_custom_call.1
$region0: #{tpu_custom_call.1}
  #allocation0 [shape = 'u32[]', space=smem, size = 0x4, offset = 0x4, fixed_abs, tag = 'smem constant byte address 0x4 - core index']
  #allocation1 [shape = 'u32[72,128]{1,0:T(1,128)}', space=vmem, size = 0x9000, scoped, tag = 'internal scratch']
  %s0 = inlined_call_operand.hbm [shape: f32[8,32], index: 0, kind: input, shape index: {}]
  %s1 = inlined_call_operand.hbm [shape: f32[1,32], index: 1, kind: input, shape index: {}]
  %s2 = inlined_call_operand.vmem [shape: f32[1,32], index: 2, kind: input, shape index: {}]
  %s3 = inlined_call_operand.hbm [shape: f32[8,32], index: 3, kind: output, shape index: {}]
  %s4 = sld [smem:[#allocation0]]
  $region30: #{tpu_custom_call.1} parent=0
    _
  %s6 = ssub.s32 1, %s4
  %s7 = scalar_select 0, %s6, %s4
  $region1: #{tpu_custom_call.1} parent=0
    #allocation2 [shape = 'u8[4096]{0}', space=vmem, size = 0x1000, scoped, tag = 'input window, operand 0, single buffered']
    #allocation3 [shape = 's32[1]{0}', space=sflag, size = 0x4, scoped, tag = 'scoped memory for tpu_custom_call.1']
    #allocation4 [shape = 's32[1]{0}', space=sflag, size = 0x4, scoped, tag = 'scoped memory for tpu_custom_call.1']
    #allocation5 [shape = 'u8[512]{0}', space=vmem, size = 0x400, scoped, tag = 'input window, operand 1, single buffered']
    #allocation6 [shape = 's32[1]{0}', space=sflag, size = 0x4, scoped, tag = 'scoped memory for tpu_custom_call.1']
    #allocation7 [shape = 'u8[4096]{0}', space=vmem, size = 0x1000, scoped, tag = 'output window, operand 0, single buffered']
    %8 = vsyncpa [#allocation3], 0
    %9 = vsyncpa [#allocation6], 0
    %10 = vsyncpa [#allocation4], 0
    // Predicated region
    $region2: #{tpu_custom_call.1} parent=1 // pred_check
      _
    $region3: #{tpu_custom_call.1} parent=1 // pred_check_branch
      %12 = sbr.rel (0) target = $region5
    $region4: #{tpu_custom_call.1} parent=1 // pred_region
      %14 = vsyncadd [#allocation3], 0
      %s16 = sshll.u32 %s0, 4
      %s17 = int_to_ptr.hbm [resolvable:$true] %s16
      %s18 = sshll.u32 [#allocation2], 4
      %s19 = int_to_ptr.vmem [resolvable:$true] %s18
      %21 = dma.hbm_to_vmem [thread:$0]  %s17, 128, %s19, [#allocation3]
    $region5: #{tpu_custom_call.1} parent=1 // pred_fallthru
      _
    // Predicated region
    $region6: #{tpu_custom_call.1} parent=1 // pred_check
      _
    $region7: #{tpu_custom_call.1} parent=1 // pred_check_branch
      %23 = sbr.rel (0) target = $region9
    $region8: #{tpu_custom_call.1} parent=1 // pred_region
      %25 = vsyncadd [#allocation6], 0
      %s27 = sshll.u32 %s1, 4
      %s28 = int_to_ptr.hbm [resolvable:$true] %s27
      %s29 = sshll.u32 [#allocation5], 4
      %s30 = int_to_ptr.vmem [resolvable:$true] %s29
      %32 = dma.hbm_to_vmem [thread:$0]  %s28, 16, %s30, [#allocation6]
    $region9: #{tpu_custom_call.1} parent=1 // pred_fallthru
      _
    // Predicated region
    $region10: #{tpu_custom_call.1} parent=1 // pred_check
      _
    $region11: #{tpu_custom_call.1} parent=1 // pred_check_branch
      %34 = sbr.rel (0) target = $region13
    $region12: #{tpu_custom_call.1} parent=1 // pred_region
      _
    $region13: #{tpu_custom_call.1} parent=1 // pred_fallthru
      _
    // Predicated region
    $region14: #{tpu_custom_call.1} parent=1 // pred_check
      _
    $region15: #{tpu_custom_call.1} parent=1 // pred_check_branch
      %36 = sbr.rel (0) target = $region17
    $region16: #{tpu_custom_call.1} parent=1 // pred_region
      %38 = dma.done [#allocation3], 128
    $region17: #{tpu_custom_call.1} parent=1 // pred_fallthru
      _
    // Predicated region
    $region18: #{tpu_custom_call.1} parent=1 // pred_check
      _
    $region19: #{tpu_custom_call.1} parent=1 // pred_check_branch
      %40 = sbr.rel (0) target = $region21
    $region20: #{tpu_custom_call.1} parent=1 // pred_region
      %42 = dma.done [#allocation6], 16
    $region21: #{tpu_custom_call.1} parent=1 // pred_fallthru
      _
    %v43 = vld [vmem:[#allocation2] sm:$0xff]
    %v44 = vmul.f32 %v43, %v43
    %vm45 = vcmask 261120
    %v46 = vsel %vm45, %v44, 0.0
    %47 = vadd.xlane.f32.xlu0 %v46
    %v48 = vpop.xlane.xlu0 %47
    %v49 = vrsqrt.pop %v48
    %v50 = vmul.f32 %v49, %v48
    %v51 = vmul.f32 %v50, %v49
    %v52 = vmul.f32 0.5, %v51
    %v53 = vsub.f32 1.5, %v52
    %v54 = vmul.f32 %v49, %v53
    %v55 = vmul.f32 %v48, %v54
    %vm56 = vcmp.eq.f32.partialorder %v48, inf
    %v57 = vsel %vm56, %v48, %v55
    %vm58 = vcmp.eq.f32.partialorder %v48, 0.0
    %v59 = vand.u32 %v48, 2147483648
    %v60 = vsel %vm58, %v59, %v57
    %v61 = vrot.slane %v60, 4
    %v62 = vadd.f32 %v60, %v61
    %v63 = vrot.slane %v62, 2
    %v64 = vadd.f32 %v62, %v63
    %v65 = vrot.slane %v64, 1
    %v66 = vadd.f32 %v64, %v65
    %v67 = vrcp.pop 8.0
    %v68 = vmul.f32 8.0, %v67
    %v69 = vsub.f32 1.0, %v68
    %v70 = vmul.f32 %v67, %v69
    %v71 = vadd.f32 %v67, %v70
    %vm72 = vweird.f32 %v67
    %v73 = vsel %vm72, %v67, %v71
    %v74 = vmul.f32 %v66, %v73
    %v75 = vadd.f32 %v74, 1e-06
    %v76 = vrcp.pop %v75
    %v77 = vmul.f32 %v75, %v76
    %v78 = vsub.f32 1.0, %v77
    %v79 = vmul.f32 %v76, %v78
    %v80 = vadd.f32 %v76, %v79
    %vm81 = vweird.f32 %v75
    %vm82 = vweird.f32 %v76
    %vm83 = vmor %vm81, %vm82
    %v84 = vsel %vm83, %v76, %v80
    %v85 = vand.u32 2147483647, %v75
    %vm86 = vcmp.eq.f32.partialorder %v85, 8.507059e+37
    %v87 = vand.u32 %v75, 2147483648
    %v88 = vor.u32 1.1754944e-38, %v87
    %v89 = vsel %vm86, %v88, %v84
    %v90 = vmul.f32 %v60, %v89
    %v91 = vld [vmem:[#allocation5] sm:$0x1]
    %v92 = vmul.f32 %v43, %v90
    %v94 = vperm.slane %v91, 0
    %v96 = vmul.f32 %v94, %v92
    %v97 = vld [vmem:[%s2] sm:$0x1]
    %v99 = vperm.slane %v97, 0
    %v101 = vadd.f32 %v96, %v99
    %102 = vst.msk [vmem:[#allocation7] sm:$0xff] %vm45, %v101
    // Predicated region
    $region22: #{tpu_custom_call.1} parent=1 // pred_check
      _
    $region23: #{tpu_custom_call.1} parent=1 // pred_check_branch
      %104 = sbr.rel (0) target = $region25
    $region24: #{tpu_custom_call.1} parent=1 // pred_region
      %106 = vsyncadd [#allocation4], 0
      %s108 = sshll.u32 [#allocation7], 4
      %s109 = int_to_ptr.vmem [resolvable:$true] %s108
      %s110 = sshll.u32 %s3, 4
      %s111 = int_to_ptr.hbm [resolvable:$true] %s110
      %113 = dma.vmem_to_hbm [thread:$0]  %s109, 128, %s111, [#allocation4]
    $region25: #{tpu_custom_call.1} parent=1 // pred_fallthru
      _
    // Predicated region
    $region26: #{tpu_custom_call.1} parent=1 // pred_check
      _
    $region27: #{tpu_custom_call.1} parent=1 // pred_check_branch
      %115 = sbr.rel (0) target = $region29
    $region28: #{tpu_custom_call.1} parent=1 // pred_region
      %117 = dma.done [#allocation4], 128
    $region29: #{tpu_custom_call.1} parent=1 // pred_fallthru
      _
    %118 = vsyncpa [#allocation3], 1
    %119 = vsyncpa [#allocation6], 1
    %120 = vsyncpa [#allocation4], 1

</llo_original>
